<compile_context>
chip_gen: v7x
topology: tpu7x:2x2x1
jax: 0.10.0
libtpu: 0.0.40
codegen_flags: <defaults>
</compile_context>

<pallas_src>
import jax
import jax.numpy as jnp
from jax.experimental import pallas as pl
from jax.experimental.pallas import tpu as pltpu

_LANE = 128


def _copy_kernel(x_ref, o_ref):
    # The entire "forward pass": copy the current tile through unchanged.
    o_ref[...] = x_ref[...]


def _sublane_multiple(dtype) -> int:
    itemsize = jnp.dtype(dtype).itemsize
    if itemsize >= 4:
        return 8
    if itemsize == 2:
        return 16
    return 32


def _round_up(x: int, m: int) -> int:
    return ((x + m - 1) // m) * m


def _pick_layout(total: int, sublane: int):
    """Pick (lane_width, rows_aligned, pad_elems) for a lane-dense 2D slab."""
    # Prefer the widest last dim that factorizes `total` with sublane-aligned
    # rows -> zero padding, fewer DMA descriptors per block.
    for lane_w in (1024, 512, 256, 128):
        if total % (lane_w * sublane) == 0:
            return lane_w, total // lane_w, 0
    # Fallback: minimal pad up to a sublane multiple of 128-lane rows.
    lane_w = _LANE
    rows = pl.cdiv(total, lane_w)
    rows_aligned = _round_up(rows, sublane)
    pad = rows_aligned * lane_w - total
    return lane_w, rows_aligned, pad


def _pick_block_bytes() -> int:
    """Gate block size by chip generation (VMEM capacity)."""
    try:
        vmem_bytes = pltpu.get_tpu_info().vmem_capacity_bytes
    except Exception:
        vmem_bytes = 64 << 20  # conservative (v7x-sized)
    if vmem_bytes <= (64 << 20):
        return 2 << 20  # v7x: keep double-buffered in+out footprint ~8 MiB
    return 4 << 20      # v5e / v6e: ~16 MiB footprint, plenty of headroom


def _identity_copy_kernel(x: jax.Array) -> jax.Array:
    """Explicit Pallas tile-for-tile copy (kernel-parity path)."""
    orig_shape = x.shape
    orig_dtype = x.dtype
    itemsize = jnp.dtype(orig_dtype).itemsize

    total = 1
    for s in orig_shape:
        total *= s
    if total == 0:
        return x

    sublane = _sublane_multiple(orig_dtype)
    lane_w, rows, pad = _pick_layout(total, sublane)

    flat = x.reshape(-1)
    if pad:
        flat = jnp.pad(flat, (0, pad))
    x2d = flat.reshape(rows, lane_w)

    block_bytes = _pick_block_bytes()
    tile_rows = block_bytes // (lane_w * itemsize)
    tile_rows = max(sublane, (tile_rows // sublane) * sublane)
    tile_rows = min(tile_rows, rows)

    grid = (pl.cdiv(rows, tile_rows),)  # partial last block masked by Pallas

    out2d = pl.pallas_call(
        _copy_kernel,
        out_shape=jax.ShapeDtypeStruct((rows, lane_w), orig_dtype),
        grid=grid,
        in_specs=[pl.BlockSpec((tile_rows, lane_w), lambda i: (i, 0))],
        out_specs=pl.BlockSpec((tile_rows, lane_w), lambda i: (i, 0)),
        compiler_params=pltpu.CompilerParams(
            dimension_semantics=("parallel",),
            vmem_limit_bytes=32 << 20,
        ),
        cost_estimate=pl.CostEstimate(
            flops=0,
            transcendentals=0,
            bytes_accessed=2 * total * itemsize,
        ),
    )(x2d)

    out_flat = out2d.reshape(-1)
    if pad:
        out_flat = out_flat[:total]
    return out_flat.reshape(orig_shape)


def identity_loss(
    model_output: jax.Array,
    dummy_label: jax.Array,
    *,
    use_pallas_kernel: bool = False,
) -> jax.Array:
    """Pallas equivalent of IdentityLoss.forward: returns model_output unchanged.

    Fast path (default): pure passthrough, zero HBM traffic.
    use_pallas_kernel=True: route through an explicit Pallas copy kernel for
    framework/kernel parity.
    """
    del dummy_label  # unused, matching the PyTorch module semantics
    if not use_pallas_kernel:
        return model_output
    return _identity_copy_kernel(model_output)


if __name__ == "__main__":
    key = jax.random.PRNGKey(0)
    k1, k2, k3 = jax.random.split(key, 3)

    # Small NCHW-shaped inputs consistent with the Burgers example usage.
    model_output = jax.random.normal(k1, (2, 4, 16, 16), dtype=jnp.float32)
    dummy_label = jax.random.normal(k2, (2, 4, 16, 16), dtype=jnp.float32)

    # Fast path: true passthrough.
    passthrough = identity_loss(model_output, dummy_label)
    passthrough = jax.block_until_ready(passthrough)
    assert passthrough.shape == model_output.shape
    assert passthrough.dtype == model_output.dtype
    assert bool(jnp.all(passthrough == model_output))

    # Kernel-parity path: explicit Pallas copy.
    result = identity_loss(model_output, dummy_label, use_pallas_kernel=True)
    result = jax.block_until_ready(result)
    assert result.shape == model_output.shape
    assert result.dtype == model_output.dtype
    assert bool(jnp.all(result == model_output))

    # Also exercise the non-aligned fallback (pad + mask) path once.
    odd = jax.random.normal(k3, (3, 5, 7), dtype=jnp.float32)
    odd_out = jax.block_until_ready(
        identity_loss(odd, odd, use_pallas_kernel=True)
    )
    assert odd_out.shape == odd.shape
    assert bool(jnp.all(odd_out == odd))

    print("KERNEL_OK")
</pallas_src>

<mosaic_0001>
module attributes {stable_mosaic.version = 11 : i64} {
  func.func @_copy_kernel(%arg0: i32, %arg1: memref<8x256xf32, #tpu.memory_space<vmem>>, %arg2: memref<8x256xf32, #tpu.memory_space<vmem>>) attributes {dimension_semantics = [#tpu.dimension_semantics<parallel>], iteration_bounds = array<i64: 1>, scalar_prefetch = 0 : i64, scratch_operands = 0 : i64, tpu.core_type = #tpu.core_type<tc>, window_params = [{transform_indices = @transform_0, window_bounds = array<i64: 8, 256>}, {transform_indices = @transform_1, window_bounds = array<i64: 8, 256>}]} {
    %c0 = arith.constant 0 : index
    %c0_0 = arith.constant 0 : index
    %0 = vector.load %arg1[%c0, %c0_0] : memref<8x256xf32, #tpu.memory_space<vmem>>, vector<8x256xf32>
    %c0_1 = arith.constant 0 : index
    %c0_2 = arith.constant 0 : index
    %1 = vector.load %arg2[%c0_1, %c0_2] : memref<8x256xf32, #tpu.memory_space<vmem>>, vector<8x256xf32>
    tpu.vector_store %arg2[%c0_1, %c0_2], %0 {strides = array<i32>} : memref<8x256xf32, #tpu.memory_space<vmem>>, vector<8x256xf32>,
    return
  }
  func.func @transform_0(%arg0: i32) -> (i32, i32) {
    %c0_i32 = arith.constant 0 : i32
    %c0_i32_0 = arith.constant 0 : i32
    return %arg0, %c0_i32 : i32, i32
  }
  func.func @transform_1(%arg0: i32) -> (i32, i32) {
    %c0_i32 = arith.constant 0 : i32
    %c0_i32_0 = arith.constant 0 : i32
    return %arg0, %c0_i32 : i32, i32
  }
}

</mosaic_0001>

<llo_original>
// kernel: tpu_custom_call.1
$region0: #{tpu_custom_call.1}
  #allocation0 [shape = 'u32[]', space=smem, size = 0x4, offset = 0x4, fixed_abs, tag = 'smem constant byte address 0x4 - core index']
  #allocation1 [shape = 'u32[144,128]{1,0:T(1,128)}', space=vmem, size = 0x12000, scoped, tag = 'internal scratch']
  %s0 = inlined_call_operand.hbm [shape: f32[8,256], index: 0, kind: input, shape index: {}]
  %s1 = inlined_call_operand.hbm [shape: f32[8,256], index: 1, kind: output, shape index: {}]
  %s2 = sld [smem:[#allocation0]]
  $region18: #{tpu_custom_call.1} parent=0
    _
  %s4 = ssub.s32 1, %s2
  %s5 = scalar_select 0, %s4, %s2
  $region1: #{tpu_custom_call.1} parent=0
    #allocation2 [shape = 'u8[8192]{0}', space=vmem, size = 0x2000, scoped, tag = 'input window, operand 0, single buffered']
    #allocation3 [shape = 's32[1]{0}', space=sflag, size = 0x4, scoped, tag = 'scoped memory for tpu_custom_call.1']
    #allocation4 [shape = 's32[1]{0}', space=sflag, size = 0x4, scoped, tag = 'scoped memory for tpu_custom_call.1']
    #allocation5 [shape = 'u8[8192]{0}', space=vmem, size = 0x2000, scoped, tag = 'output window, operand 0, single buffered']
    %6 = vsyncpa [#allocation3], 0
    %7 = vsyncpa [#allocation4], 0
    // Predicated region
    $region2: #{tpu_custom_call.1} parent=1 // pred_check
      _
    $region3: #{tpu_custom_call.1} parent=1 // pred_check_branch
      %9 = sbr.rel (0) target = $region5
    $region4: #{tpu_custom_call.1} parent=1 // pred_region
      %s11 = ssub.s32 256, 256
      %12 = vsyncadd [#allocation3], %s11
      %s14 = sshll.u32 [#allocation2], 4
      %s15 = int_to_ptr.vmem [resolvable:$true] %s14
      %17 = dma.hbm_to_vmem [thread:$0]  %s0, 256, %s15, [#allocation3]
    $region5: #{tpu_custom_call.1} parent=1 // pred_fallthru
      _
    // Predicated region
    $region6: #{tpu_custom_call.1} parent=1 // pred_check
      _
    $region7: #{tpu_custom_call.1} parent=1 // pred_check_branch
      %19 = sbr.rel (0) target = $region9
    $region8: #{tpu_custom_call.1} parent=1 // pred_region
      %20 = dma.done [#allocation3], 256
    $region9: #{tpu_custom_call.1} parent=1 // pred_fallthru
      _
    %v21 = vld [vmem:[#allocation2] sm:$0xff]
    %v22 = vld [vmem:[#allocation2 + $0x8] sm:$0xff]
    %23 = vst [vmem:[#allocation5] sm:$0xff] %v21
    %24 = vst [vmem:[#allocation5 + $0x8] sm:$0xff] %v22
    // Predicated region
    $region10: #{tpu_custom_call.1} parent=1 // pred_check
      _
    $region11: #{tpu_custom_call.1} parent=1 // pred_check_branch
      %26 = sbr.rel (0) target = $region13
    $region12: #{tpu_custom_call.1} parent=1 // pred_region
      %s28 = ssub.s32 256, 256
      %29 = vsyncadd [#allocation4], %s28
      %s31 = sshll.u32 [#allocation5], 4
      %s32 = int_to_ptr.vmem [resolvable:$true] %s31
      %34 = dma.vmem_to_hbm [thread:$0]  %s32, 256, %s1, [#allocation4]
    $region13: #{tpu_custom_call.1} parent=1 // pred_fallthru
      _
    // Predicated region
    $region14: #{tpu_custom_call.1} parent=1 // pred_check
      _
    $region15: #{tpu_custom_call.1} parent=1 // pred_check_branch
      %36 = sbr.rel (0) target = $region17
    $region16: #{tpu_custom_call.1} parent=1 // pred_region
      %37 = dma.done [#allocation4], 256
    $region17: #{tpu_custom_call.1} parent=1 // pred_fallthru
      _
    %38 = vsyncpa [#allocation3], 1
    %39 = vsyncpa [#allocation4], 1

</llo_original>
